<compile_context>
chip_gen: v5e
topology: v5e:2x2
jax: 0.10.0
libtpu: 0.0.40
codegen_flags: <defaults>
</compile_context>

<pallas_src>
import functools

import jax
import jax.numpy as jnp
from jax.experimental import pallas as pl
from jax.experimental.pallas import tpu as pltpu

_LANE = 128


def _round_up(n, m):
    return ((n + m - 1) // m) * m


def _maml_mlp_kernel(x_ref, w1_ref, b1_ref, w2_ref, b2_ref, o_ref):
    """One batch tile of the task-block-diagonal MLP.

    x_ref : [tile_b, K1]  task-packed inputs (bf16)
    w1_ref: [K1, N1]      block-diagonal fast weights, layer 1 (bf16)
    b1_ref: [1, N1]       task-packed biases, layer 1 (f32)
    w2_ref: [N1, N2]      block-diagonal fast weights, layer 2 (bf16)
    b2_ref: [1, N2]       task-packed biases, layer 2 (f32)
    o_ref : [tile_b, N2]  task-packed outputs
    """
    # fc1 on the MXU, f32 accumulation; bias-add + ReLU in f32 on the VPU.
    h = jnp.dot(x_ref[...], w1_ref[...], preferred_element_type=jnp.float32)
    h = jnp.maximum(h + b1_ref[...], 0.0)
    # fc2: cast activations to the bf16 weight dtype for the MXU; accum f32.
    out = jnp.dot(h.astype(w2_ref.dtype), w2_ref[...],
                  preferred_element_type=jnp.float32)
    o_ref[...] = (out + b2_ref[...]).astype(o_ref.dtype)


def pack_fast_weights(w1, b1, w2, b2, *, compute_dtype=jnp.bfloat16):
    """One-time prep, run right after adapt()/clone(), NOT per forward.

    Packs per-task fast weights block-diagonally:
      w1: [T, Din, H]  -> W1p [K1, N1]   (K1 = rup(T*Din,128), N1 = rup(T*H,128))
      w2: [T, H, Dout] -> W2p [N1, N2]   (N2 = rup(T*Dout,128))
      b1: [T, H]       -> b1p [1, N1]
      b2: [T, Dout]    -> b2p [1, N2]
    Off-diagonal blocks are zero, so tasks cannot cross-talk.
    """
    T, Din, H = w1.shape
    Dout = w2.shape[2]
    K1 = _round_up(T * Din, _LANE)
    N1 = _round_up(T * H, _LANE)
    N2 = _round_up(T * Dout, _LANE)

    w1p = jnp.zeros((K1, N1), compute_dtype)
    w2p = jnp.zeros((N1, N2), compute_dtype)
    b1p = jnp.zeros((1, N1), jnp.float32)
    b2p = jnp.zeros((1, N2), jnp.float32)
    for t in range(T):
        w1p = w1p.at[t * Din:(t + 1) * Din, t * H:(t + 1) * H].set(
            w1[t].astype(compute_dtype))
        w2p = w2p.at[t * H:(t + 1) * H, t * Dout:(t + 1) * Dout].set(
            w2[t].astype(compute_dtype))
        b1p = b1p.at[0, t * H:(t + 1) * H].set(b1[t].astype(jnp.float32))
        b2p = b2p.at[0, t * Dout:(t + 1) * Dout].set(b2[t].astype(jnp.float32))
    return w1p, b1p, w2p, b2p


@functools.partial(jax.jit, static_argnames=("tile_b",))
def maml_forward_packed(x, w1p, b1p, w2p, b2p, *, tile_b=128):
    """Fused forward over all adapted tasks.

    Args:
      x: [T, B, Din] per-task inputs.
      w1p, b1p, w2p, b2p: outputs of pack_fast_weights (block-diagonal).
    Returns:
      Task-packed output [B, N2] (column block t*Dout:(t+1)*Dout = task t),
      float32, lane-dense.
    """
    T, B, Din = x.shape
    K1, N1 = w1p.shape
    N2 = w2p.shape[1]
    compute_dtype = w1p.dtype

    B_p = _round_up(B, tile_b)

    # Per-forward x prep: cast to bf16 first (halves transpose bytes), then a
    # single transpose/reshape into the task-packed [B, T*Din] layout, padded
    # with lax.pad only when needed.  In a real online-MAML loop the data
    # pipeline would emit this layout directly.
    xb = x.astype(compute_dtype)
    x_packed = jnp.transpose(xb, (1, 0, 2)).reshape(B, T * Din)
    if (K1 != T * Din) or (B_p != B):
        x_packed = jax.lax.pad(
            x_packed, jnp.zeros((), compute_dtype),
            ((0, B_p - B, 0), (0, K1 - T * Din, 0)))

    nb = B_p // tile_b
    grid = (nb,)

    out_itemsize = jnp.dtype(jnp.float32).itemsize
    cost = pl.CostEstimate(
        flops=2 * B_p * (K1 * N1 + N1 * N2),
        transcendentals=0,
        bytes_accessed=(x_packed.size * x_packed.dtype.itemsize
                        + w1p.size * w1p.dtype.itemsize
                        + w2p.size * w2p.dtype.itemsize
                        + b1p.size * 4 + b2p.size * 4
                        + B_p * N2 * out_itemsize),
    )

    out_packed = pl.pallas_call(
        _maml_mlp_kernel,
        out_shape=jax.ShapeDtypeStruct((B_p, N2), jnp.float32),
        grid_spec=pltpu.PrefetchScalarGridSpec(
            num_scalar_prefetch=0,
            grid=grid,
            in_specs=[
                # x / out: stream one [tile_b, lane-dense] tile per step.
                pl.BlockSpec((tile_b, K1), lambda i: (i, 0)),
                # Weights/biases: constant index map -> resident in VMEM
                # across the batch-tile axis, DMA'd once.
                pl.BlockSpec((K1, N1), lambda i: (0, 0)),
                pl.BlockSpec((1, N1), lambda i: (0, 0)),
                pl.BlockSpec((N1, N2), lambda i: (0, 0)),
                pl.BlockSpec((1, N2), lambda i: (0, 0)),
            ],
            out_specs=pl.BlockSpec((tile_b, N2), lambda i: (i, 0)),
        ),
        compiler_params=pltpu.CompilerParams(
            # Single grid axis over batch tiles; "parallel" lets v7x shard the
            # two tiles 1-per-TensorCore.  On v5e/v6e it is just 2 fat steps.
            dimension_semantics=("parallel",),
            # Explicit VMEM budget (actual use < 1 MiB) so the tiling ports
            # unchanged to v7x's smaller physical VMEM.
            vmem_limit_bytes=16 * 1024 * 1024,
        ),
        cost_estimate=cost,
    )(x_packed, w1p, b1p, w2p, b2p)

    # Padded batch rows (if any) hold ReLU(b1) @ w2 + b2 garbage; slice them
    # off.  At the demo shapes B_p == B so this is a no-op (no HBM pass).
    if B_p != B:
        out_packed = out_packed[:B]
    return out_packed


def unpack_output(out_packed, T, Dout):
    """[B, N2] task-packed -> [T, B, Dout] (verification / consumer layout)."""
    B = out_packed.shape[0]
    return jnp.transpose(
        out_packed[:, :T * Dout].reshape(B, T, Dout), (1, 0, 2))


def reference_forward(x, w1, b1, w2, b2, compute_dtype=jnp.bfloat16):
    """Pure-JAX reference emulating the kernel's bf16-input / f32-accum math."""
    xb = x.astype(compute_dtype).astype(jnp.float32)
    w1b = w1.astype(compute_dtype).astype(jnp.float32)
    w2b = w2.astype(compute_dtype).astype(jnp.float32)
    h = jnp.einsum('tbd,tdh->tbh', xb, w1b,
                   precision=jax.lax.Precision.HIGHEST) + b1[:, None, :]
    h = jnp.maximum(h, 0.0)
    hb = h.astype(compute_dtype).astype(jnp.float32)
    return jnp.einsum('tbh,tho->tbo', hb, w2b,
                      precision=jax.lax.Precision.HIGHEST) + b2[:, None, :]


if __name__ == "__main__":
    # Small MAML-style shapes: 4 adapted tasks, 256 rows each, 32->64->32 MLP.
    # T*Din = 128, T*H = 256, T*Dout = 128: the packed layout is exactly
    # lane-dense with zero dead columns.
    T, B, Din, H, Dout = 4, 256, 32, 64, 32

    key = jax.random.PRNGKey(0)
    kx, kw1, kb1, kw2, kb2 = jax.random.split(key, 5)

    x = jax.random.normal(kx, (T, B, Din), dtype=jnp.float32)
    # Deterministic per-task fast parameters (synthetic, not a checkpoint).
    w1 = jax.random.normal(kw1, (T, Din, H), dtype=jnp.float32) * 0.1
    b1 = jax.random.normal(kb1, (T, H), dtype=jnp.float32) * 0.01
    w2 = jax.random.normal(kw2, (T, H, Dout), dtype=jnp.float32) * 0.1
    b2 = jax.random.normal(kb2, (T, Dout), dtype=jnp.float32) * 0.01

    # One-time prep (would run right after adapt()/clone(), outside the
    # per-forward hot path).
    packed = pack_fast_weights(w1, b1, w2, b2)

    # Hot path: fused forward over all tasks.
    out_packed = maml_forward_packed(x, *packed)
    out_packed = jax.block_until_ready(out_packed)

    out = unpack_output(out_packed, T, Dout)
    ref = reference_forward(x, w1, b1, w2, b2)
    assert out.shape == (T, B, Dout)
    assert jnp.allclose(out, ref, atol=1e-2, rtol=1e-2), "mismatch vs reference"

    print("KERNEL_OK")
</pallas_src>

<mosaic_0001>
module attributes {stable_mosaic.version = 11 : i64} {
  func.func @_maml_mlp_kernel(%arg0: i32, %arg1: memref<128x128xbf16, #tpu.memory_space<vmem>>, %arg2: memref<128x256xbf16, #tpu.memory_space<vmem>>, %arg3: memref<1x256xf32, #tpu.memory_space<vmem>>, %arg4: memref<256x128xbf16, #tpu.memory_space<vmem>>, %arg5: memref<1x128xf32, #tpu.memory_space<vmem>>, %arg6: memref<128x128xf32, #tpu.memory_space<vmem>>) attributes {dimension_semantics = [#tpu.dimension_semantics<parallel>], iteration_bounds = array<i64: 2>, scalar_prefetch = 0 : i64, scratch_operands = 0 : i64, tpu.core_type = #tpu.core_type<tc>, window_params = [{transform_indices = @transform_0, window_bounds = array<i64: 128, 128>}, {pipeline_mode = #tpu.pipeline_mode<synchronous>, transform_indices = @transform_1, window_bounds = array<i64: 128, 256>}, {pipeline_mode = #tpu.pipeline_mode<synchronous>, transform_indices = @transform_2, window_bounds = array<i64: 1, 256>}, {pipeline_mode = #tpu.pipeline_mode<synchronous>, transform_indices = @transform_3, window_bounds = array<i64: 256, 128>}, {pipeline_mode = #tpu.pipeline_mode<synchronous>, transform_indices = @transform_4, window_bounds = array<i64: 1, 128>}, {transform_indices = @transform_5, window_bounds = array<i64: 128, 128>}]} {
    %c0 = arith.constant 0 : index
    %c0_0 = arith.constant 0 : index
    %0 = vector.load %arg1[%c0, %c0_0] : memref<128x128xbf16, #tpu.memory_space<vmem>>, vector<128x128xbf16>
    %c0_1 = arith.constant 0 : index
    %c0_2 = arith.constant 0 : index
    %1 = vector.load %arg2[%c0_1, %c0_2] : memref<128x256xbf16, #tpu.memory_space<vmem>>, vector<128x256xbf16>
    %cst = arith.constant dense<0.000000e+00> : vector<128x256xf32>
    %2 = tpu.matmul %0, %1, %cst {dimension_numbers = #tpu.dot_dimension_numbers<[1], [0], [0], [1], [0, 0, 1, 1], [], []>} : vector<128x128xbf16>, vector<128x256xbf16>, vector<128x256xf32> -> vector<128x256xf32>
    %c0_3 = arith.constant 0 : index
    %c0_4 = arith.constant 0 : index
    %3 = vector.load %arg3[%c0_3, %c0_4] : memref<1x256xf32, #tpu.memory_space<vmem>>, vector<1x256xf32>
    %4 = vector.broadcast %3 : vector<1x256xf32> to vector<128x256xf32>
    %5 = arith.addf %2, %4 : vector<128x256xf32>
    %cst_5 = arith.constant 0.000000e+00 : f32
    %6 = vector.broadcast %cst_5 : f32 to vector<128x256xf32>
    %7 = arith.maximumf %5, %6 : vector<128x256xf32>
    %8 = arith.truncf %7 : vector<128x256xf32> to vector<128x256xbf16>
    %c0_6 = arith.constant 0 : index
    %c0_7 = arith.constant 0 : index
    %9 = vector.load %arg4[%c0_6, %c0_7] : memref<256x128xbf16, #tpu.memory_space<vmem>>, vector<256x128xbf16>
    %cst_8 = arith.constant dense<0.000000e+00> : vector<128x128xf32>
    %10 = tpu.matmul %8, %9, %cst_8 {dimension_numbers = #tpu.dot_dimension_numbers<[1], [0], [0], [1], [0, 0, 1, 1], [], []>} : vector<128x256xbf16>, vector<256x128xbf16>, vector<128x128xf32> -> vector<128x128xf32>
    %c0_9 = arith.constant 0 : index
    %c0_10 = arith.constant 0 : index
    %11 = vector.load %arg5[%c0_9, %c0_10] : memref<1x128xf32, #tpu.memory_space<vmem>>, vector<1x128xf32>
    %12 = vector.broadcast %11 : vector<1x128xf32> to vector<128x128xf32>
    %13 = arith.addf %10, %12 : vector<128x128xf32>
    %c0_11 = arith.constant 0 : index
    %c0_12 = arith.constant 0 : index
    %14 = vector.load %arg6[%c0_11, %c0_12] : memref<128x128xf32, #tpu.memory_space<vmem>>, vector<128x128xf32>
    tpu.vector_store %arg6[%c0_11, %c0_12], %13 {strides = array<i32>} : memref<128x128xf32, #tpu.memory_space<vmem>>, vector<128x128xf32>,
    return
  }
  func.func @transform_0(%arg0: i32) -> (i32, i32) {
    %c0_i32 = arith.constant 0 : i32
    %c0_i32_0 = arith.constant 0 : i32
    return %arg0, %c0_i32 : i32, i32
  }
  func.func @transform_1(%arg0: i32) -> (i32, i32) {
    %c0_i32 = arith.constant 0 : i32
    %c0_i32_0 = arith.constant 0 : i32
    %c0_i32_1 = arith.constant 0 : i32
    return %c0_i32, %c0_i32_0 : i32, i32
  }
  func.func @transform_2(%arg0: i32) -> (i32, i32) {
    %c0_i32 = arith.constant 0 : i32
    %c0_i32_0 = arith.constant 0 : i32
    %c0_i32_1 = arith.constant 0 : i32
    return %c0_i32, %c0_i32_0 : i32, i32
  }
  func.func @transform_3(%arg0: i32) -> (i32, i32) {
    %c0_i32 = arith.constant 0 : i32
    %c0_i32_0 = arith.constant 0 : i32
    %c0_i32_1 = arith.constant 0 : i32
    return %c0_i32, %c0_i32_0 : i32, i32
  }
  func.func @transform_4(%arg0: i32) -> (i32, i32) {
    %c0_i32 = arith.constant 0 : i32
    %c0_i32_0 = arith.constant 0 : i32
    %c0_i32_1 = arith.constant 0 : i32
    return %c0_i32, %c0_i32_0 : i32, i32
  }
  func.func @transform_5(%arg0: i32) -> (i32, i32) {
    %c0_i32 = arith.constant 0 : i32
    %c0_i32_0 = arith.constant 0 : i32
    return %arg0, %c0_i32 : i32, i32
  }
}

</mosaic_0001>

<llo_original>
// kernel: maml_forward_packed.1
$region0: #{maml_forward_packed.1}
  #allocation0 [shape = 'u32[]', space=smem, size = 0x4, offset = 0x4, fixed_abs, tag = 'smem constant byte address 0x4 - core index']
  #allocation1 [shape = 'u32[72,128]{1,0:T(1,128)}', space=vmem, size = 0x9000, scoped, tag = 'internal scratch']
  %s0 = inlined_call_operand.vmem [shape: bf16[256,128], index: 0, kind: input, shape index: {}]
  %s1 = inlined_call_operand.vmem [shape: bf16[128,256], index: 1, kind: input, shape index: {}]
  %s2 = inlined_call_operand.vmem [shape: f32[1,256], index: 2, kind: input, shape index: {}]
  %s3 = inlined_call_operand.vmem [shape: bf16[256,128], index: 3, kind: input, shape index: {}]
  %s4 = inlined_call_operand.vmem [shape: f32[1,128], index: 4, kind: input, shape index: {}]
  %s5 = inlined_call_operand.hbm [shape: f32[256,128], index: 5, kind: output, shape index: {}]
  %s6 = sld [smem:[#allocation0]]
  $region53: #{maml_forward_packed.1} parent=0
    _
  %s8 = ssub.s32 1, %s6
  %s9 = scalar_select 0, %s8, %s6
  $region1: #{maml_forward_packed.1} parent=0
    #allocation2 [shape = 'u8[131072]{0}', space=vmem, size = 0x20000, scoped, tag = 'output window, operand 0']
    #allocation3 [shape = 's32[2]{0}', space=sflag, size = 0x8, scoped, tag = 'scoped memory for maml_forward_packed.1']
    %10 = vsyncpa [#allocation3], 0
    %s11 = scalar_lea.sflag [#allocation3], 1
    %12 = vsyncpa %s11, 0
    loop: start=0, step=1, limit=4
    $region2: #{maml_forward_packed.1} parent=1 // loop_pre_header
      _
    $region3: #{maml_forward_packed.1} parent=1 // loop_header
      %s14 = sphi 0, %s18
      %p15 = scmp.ge.s32.totalorder %s14, 4
      %s24 = sphi 0, %s26
      %s27 = sphi 0, %s24
      %s28 = sphi 0, %s27
      %s44 = sphi 0, %s28
      %s48 = sphi 0, %s48
      %s50 = sphi 0, %s48
      %s51 = sphi 0, %s50
      %s65 = sphi 0, %s51
      %s69 = sphi 0, %s69
      %s71 = sphi 0, %s69
      %s72 = sphi 0, %s71
      %s86 = sphi 0, %s72
      %s90 = sphi 0, %s90
      %s92 = sphi 0, %s90
      %s93 = sphi 0, %s92
      %s107 = sphi 0, %s93
      %s111 = sphi 0, %s111
      %s113 = sphi 0, %s111
      %s114 = sphi 0, %s113
      %s128 = sphi 0, %s114
      %s134 = sphi 0, %s136
      %s137 = sphi 0, %s134
      %s138 = sphi 0, %s137
      %s154 = sphi 0, %s138
    $region4: #{maml_forward_packed.1} parent=1 // loop_header_branch
      %17 = sbr.rel (%p15) target = $region8
    $region5: #{maml_forward_packed.1} parent=1 // loop_body
      %s19 = ssub.s32 %s14, 1
      %s20 = ssub.s32 %s14, 2
      %s21 = sadd.s32 %s14, 1
      %s22 = ssub.s32 %s14, %s21
      %p23 = scmp.eq.s32.totalorder %s22, 0
      %s25 = sadd.s32 %s24, 1
      %s26 = scalar_select %p23, %s24, %s25
      %p29 = pneg %p23
      %p30 = scmp.eq.s32.totalorder %s14, 1
      %p31 = por %p29, %p30
      %p32 = scmp.ne.s32.totalorder %s24, %s27
      %p33 = scmp.eq.s32.totalorder %s14, 0
      %p34 = por %p32, %p33
      %p35 = scmp.ne.s32.totalorder %s24, %s27
      %p36 = scmp.eq.s32.totalorder %s19, 1
      %p37 = por %p35, %p36
      %p38 = scmp.ne.s32.totalorder %s27, %s28
      %p39 = scmp.eq.s32.totalorder %s19, 0
      %p40 = por %p38, %p39
      %p41 = scmp.ne.s32.totalorder %s27, %s28
      %p42 = scmp.eq.s32.totalorder %s20, 1
      %p43 = por %p41, %p42
      %p45 = scmp.ne.s32.totalorder %s28, %s44
      %p46 = scmp.eq.s32.totalorder %s20, 0
      %p47 = por %p45, %p46
      %s49 = sadd.s32 %s48, 1
      %p52 = scmp.eq.s32.totalorder %s14, 1
      %p53 = scmp.ne.s32.totalorder %s48, %s50
      %p54 = scmp.eq.s32.totalorder %s14, 0
      %p55 = por %p53, %p54
      %p56 = scmp.ne.s32.totalorder %s48, %s50
      %p57 = scmp.eq.s32.totalorder %s19, 1
      %p58 = por %p56, %p57
      %p59 = scmp.ne.s32.totalorder %s50, %s51
      %p60 = scmp.eq.s32.totalorder %s19, 0
      %p61 = por %p59, %p60
      %p62 = scmp.ne.s32.totalorder %s50, %s51
      %p63 = scmp.eq.s32.totalorder %s20, 1
      %p64 = por %p62, %p63
      %p66 = scmp.ne.s32.totalorder %s51, %s65
      %p67 = scmp.eq.s32.totalorder %s20, 0
      %p68 = por %p66, %p67
      %s70 = sadd.s32 %s69, 1
      %p73 = scmp.eq.s32.totalorder %s14, 1
      %p74 = scmp.ne.s32.totalorder %s69, %s71
      %p75 = scmp.eq.s32.totalorder %s14, 0
      %p76 = por %p74, %p75
      %p77 = scmp.ne.s32.totalorder %s69, %s71
      %p78 = scmp.eq.s32.totalorder %s19, 1
      %p79 = por %p77, %p78
      %p80 = scmp.ne.s32.totalorder %s71, %s72
      %p81 = scmp.eq.s32.totalorder %s19, 0
      %p82 = por %p80, %p81
      %p83 = scmp.ne.s32.totalorder %s71, %s72
      %p84 = scmp.eq.s32.totalorder %s20, 1
      %p85 = por %p83, %p84
      %p87 = scmp.ne.s32.totalorder %s72, %s86
      %p88 = scmp.eq.s32.totalorder %s20, 0
      %p89 = por %p87, %p88
      %s91 = sadd.s32 %s90, 1
      %p94 = scmp.eq.s32.totalorder %s14, 1
      %p95 = scmp.ne.s32.totalorder %s90, %s92
      %p96 = scmp.eq.s32.totalorder %s14, 0
      %p97 = por %p95, %p96
      %p98 = scmp.ne.s32.totalorder %s90, %s92
      %p99 = scmp.eq.s32.totalorder %s19, 1
      %p100 = por %p98, %p99
      %p101 = scmp.ne.s32.totalorder %s92, %s93
      %p102 = scmp.eq.s32.totalorder %s19, 0
      %p103 = por %p101, %p102
      %p104 = scmp.ne.s32.totalorder %s92, %s93
      %p105 = scmp.eq.s32.totalorder %s20, 1
      %p106 = por %p104, %p105
      %p108 = scmp.ne.s32.totalorder %s93, %s107
      %p109 = scmp.eq.s32.totalorder %s20, 0
      %p110 = por %p108, %p109
      %s112 = sadd.s32 %s111, 1
      %p115 = scmp.eq.s32.totalorder %s14, 1
      %p116 = scmp.ne.s32.totalorder %s111, %s113
      %p117 = scmp.eq.s32.totalorder %s14, 0
      %p118 = por %p116, %p117
      %p119 = scmp.ne.s32.totalorder %s111, %s113
      %p120 = scmp.eq.s32.totalorder %s19, 1
      %p121 = por %p119, %p120
      %p122 = scmp.ne.s32.totalorder %s113, %s114
      %p123 = scmp.eq.s32.totalorder %s19, 0
      %p124 = por %p122, %p123
      %p125 = scmp.ne.s32.totalorder %s113, %s114
      %p126 = scmp.eq.s32.totalorder %s20, 1
      %p127 = por %p125, %p126
      %p129 = scmp.ne.s32.totalorder %s114, %s128
      %p130 = scmp.eq.s32.totalorder %s20, 0
      %p131 = por %p129, %p130
      %s132 = ssub.s32 %s14, %s21
      %p133 = scmp.eq.s32.totalorder %s132, 0
      %s135 = sadd.s32 %s134, 1
      %s136 = scalar_select %p133, %s134, %s135
      %p139 = pneg %p133
      %p140 = scmp.eq.s32.totalorder %s14, 1
      %p141 = por %p139, %p140
      %p142 = scmp.ne.s32.totalorder %s134, %s137
      %p143 = scmp.eq.s32.totalorder %s14, 0
      %p144 = por %p142, %p143
      %p145 = scmp.ne.s32.totalorder %s134, %s137
      %p146 = scmp.eq.s32.totalorder %s19, 1
      %p147 = por %p145, %p146
      %p148 = scmp.ne.s32.totalorder %s137, %s138
      %p149 = scmp.eq.s32.totalorder %s19, 0
      %p150 = por %p148, %p149
      %p151 = scmp.ne.s32.totalorder %s137, %s138
      %p152 = scmp.eq.s32.totalorder %s20, 1
      %p153 = por %p151, %p152
      %p155 = scmp.ne.s32.totalorder %s138, %s154
      %p156 = scmp.eq.s32.totalorder %s20, 0
      %p157 = por %p155, %p156
      %p158 = scmp.le.s32.totalorder 1, %s14
      %p159 = scmp.lt.s32.totalorder %s14, 3
      %p160 = pnand %p158, %p159
      %p161 = pneg %p160
      // Predicated region
      $region9: #{maml_forward_packed.1} parent=5 // pred_check
        _
      $region10: #{maml_forward_packed.1} parent=5 // pred_check_branch
        %163 = sbr.rel (%p160) target = $region12
      $region11: #{maml_forward_packed.1} parent=5 // pred_region
        %s164 = ssub.s32 %s14, 1
        // Predicated region
        $region13: #{maml_forward_packed.1} parent=11 // pred_check
          %p165 = pneg %p61
        $region14: #{maml_forward_packed.1} parent=11 // pred_check_branch
          %167 = sbr.rel (%p165) target = $region16
        $region15: #{maml_forward_packed.1} parent=11 // pred_region
          _
        $region16: #{maml_forward_packed.1} parent=11 // pred_fallthru
          _
        // Predicated region
        $region17: #{maml_forward_packed.1} parent=11 // pred_check
          %p168 = pneg %p82
        $region18: #{maml_forward_packed.1} parent=11 // pred_check_branch
          %170 = sbr.rel (%p168) target = $region20
        $region19: #{maml_forward_packed.1} parent=11 // pred_region
          _
        $region20: #{maml_forward_packed.1} parent=11 // pred_fallthru
          _
        // Predicated region
        $region21: #{maml_forward_packed.1} parent=11 // pred_check
          %p171 = pneg %p103
        $region22: #{maml_forward_packed.1} parent=11 // pred_check_branch
          %173 = sbr.rel (%p171) target = $region24
        $region23: #{maml_forward_packed.1} parent=11 // pred_region
          _
        $region24: #{maml_forward_packed.1} parent=11 // pred_fallthru
          _
        // Predicated region
        $region25: #{maml_forward_packed.1} parent=11 // pred_check
          %p174 = pneg %p124
        $region26: #{maml_forward_packed.1} parent=11 // pred_check_branch
          %176 = sbr.rel (%p174) target = $region28
        $region27: #{maml_forward_packed.1} parent=11 // pred_region
          _
        $region28: #{maml_forward_packed.1} parent=11 // pred_fallthru
          _
      $region12: #{maml_forward_packed.1} parent=5 // pred_fallthru
        _
      %p177 = scmp.lt.s32.totalorder %s14, 2
      // Predicated region
      $region29: #{maml_forward_packed.1} parent=5 // pred_check
        %p178 = pneg %p177
      $region30: #{maml_forward_packed.1} parent=5 // pred_check_branch
        %180 = sbr.rel (%p178) target = $region32
      $region31: #{maml_forward_packed.1} parent=5 // pred_region
        // Predicated region
        $region33: #{maml_forward_packed.1} parent=31 // pred_check
          %p181 = pneg %p34
        $region34: #{maml_forward_packed.1} parent=31 // pred_check_branch
          %183 = sbr.rel (%p181) target = $region36
        $region35: #{maml_forward_packed.1} parent=31 // pred_region
          %s184 = smul.u32 16, %s14
          %p185 = scmp.lt.s32.totalorder %s184, 31
          %s186 = scalar_select %p185, %s184, 31
          %s187 = smul.addr %s186, 4
          %s188 = scalar_lea.vmem %s0, %s187
          %s189 = smul.u32 16, %s14
        $region36: #{maml_forward_packed.1} parent=31 // pred_fallthru
          _
      $region32: #{maml_forward_packed.1} parent=5 // pred_fallthru
        _
      %p190 = scmp.le.s32.totalorder 1, %s14
      %p191 = scmp.lt.s32.totalorder %s14, 3
      %p192 = pnand %p190, %p191
      %p193 = pneg %p192
      // Predicated region
      $region37: #{maml_forward_packed.1} parent=5 // pred_check
        _
      $region38: #{maml_forward_packed.1} parent=5 // pred_check_branch
        %195 = sbr.rel (%p192) target = $region40
      $region39: #{maml_forward_packed.1} parent=5 // pred_region
        %s196 = ssub.s32 %s14, 1
        %s197 = smul.u32 16, %s19
        %p198 = scmp.lt.s32.totalorder %s197, 31
        %s199 = scalar_select %p198, %s197, 31
        %s200 = smul.addr %s199, 4
        %s201 = scalar_lea.vmem %s0, %s200
        %p202 = pneg %p40
        %p203 = pneg %p37
        %p204 = pneg %p61
        %p205 = pneg %p58
        %p206 = pneg %p82
        %p207 = pneg %p79
        %p208 = pneg %p103
        %p209 = pneg %p100
        %p210 = pneg %p124
        %p211 = pneg %p121
        %p212 = pneg %p150
        %p213 = pneg %p147
        %s214 = sand.u32 %s137, 1
        %s215 = scalar_lea.sflag [#allocation3], %s214
        %s216 = sand.u32 %s137, 1
        %s217 = smul.addr %s216, 128
        %s218 = scalar_lea.vmem [#allocation2], %s217
        %s219 = smul.u32 16, %s19
        %p220 = scmp.lt.s32.totalorder %s219, 31
        %s221 = scalar_select %p220, %s219, 31
        %s222 = smul.addr %s221, 4
        %s223 = scalar_lea.vmem %s0, %s222
        %s224 = smul.u32 16, %s19
        %s225 = smul.u32 16, %s19
        %v226 = vld [vmem:[%s223] sm:$0xf]
        %v227 = vld [vmem:[%s223 + $0x4] sm:$0xf]
        %v228 = vld [vmem:[%s223 + $0x8] sm:$0xf]
        %v229 = vld [vmem:[%s223 + $0xc] sm:$0xf]
        %v230 = vld [vmem:[%s223 + $0x10] sm:$0xf]
        %v231 = vld [vmem:[%s223 + $0x14] sm:$0xf]
        %v232 = vld [vmem:[%s223 + $0x18] sm:$0xf]
        %v233 = vld [vmem:[%s223 + $0x1c] sm:$0xf]
        %v234 = vld [vmem:[%s223 + $0x20] sm:$0xf]
        %v235 = vld [vmem:[%s223 + $0x24] sm:$0xf]
        %v236 = vld [vmem:[%s223 + $0x28] sm:$0xf]
        %v237 = vld [vmem:[%s223 + $0x2c] sm:$0xf]
        %v238 = vld [vmem:[%s223 + $0x30] sm:$0xf]
        %v239 = vld [vmem:[%s223 + $0x34] sm:$0xf]
        %v240 = vld [vmem:[%s223 + $0x38] sm:$0xf]
        %v241 = vld [vmem:[%s223 + $0x3c] sm:$0xf]
        %v242 = vld [vmem:[%s1] sm:$0xff]
        %v243 = vld [vmem:[%s1 + $0x8] sm:$0xff]
        %v244 = vld [vmem:[%s1 + $0x10] sm:$0xff]
        %v245 = vld [vmem:[%s1 + $0x18] sm:$0xff]
        %v246 = vld [vmem:[%s1 + $0x20] sm:$0xff]
        %v247 = vld [vmem:[%s1 + $0x28] sm:$0xff]
        %v248 = vld [vmem:[%s1 + $0x30] sm:$0xff]
        %v249 = vld [vmem:[%s1 + $0x38] sm:$0xff]
        %v250 = vld [vmem:[%s1 + $0x40] sm:$0xff]
        %v251 = vld [vmem:[%s1 + $0x48] sm:$0xff]
        %v252 = vld [vmem:[%s1 + $0x50] sm:$0xff]
        %v253 = vld [vmem:[%s1 + $0x58] sm:$0xff]
        %v254 = vld [vmem:[%s1 + $0x60] sm:$0xff]
        %v255 = vld [vmem:[%s1 + $0x68] sm:$0xff]
        %v256 = vld [vmem:[%s1 + $0x70] sm:$0xff]
        %v257 = vld [vmem:[%s1 + $0x78] sm:$0xff]
        %v258 = vld [vmem:[%s2] sm:$0x3]
        %v260 = vperm.slane %v258, 0
        %v261 = vperm.slane %v258, 1
        %v280 = vunpack.c.l.b16 %v226
        %v281 = vunpack.c.l.b16 %v227
        %v282 = vunpack.c.l.b16 %v228
        %v283 = vunpack.c.l.b16 %v229
        %v284 = vunpack.c.l.b16 %v230
        %v285 = vunpack.c.l.b16 %v231
        %v286 = vunpack.c.l.b16 %v232
        %v287 = vunpack.c.l.b16 %v233
        %v288 = vunpack.c.l.b16 %v234
        %v289 = vunpack.c.l.b16 %v235
        %v290 = vunpack.c.l.b16 %v236
        %v291 = vunpack.c.l.b16 %v237
        %v292 = vunpack.c.l.b16 %v238
        %v293 = vunpack.c.l.b16 %v239
        %v294 = vunpack.c.l.b16 %v240
        %v295 = vunpack.c.l.b16 %v241
        %v296 = vpack.c.b16 %v281, %v280
        %v297 = vpack.c.b16 %v283, %v282
        %v298 = vpack.c.b16 %v285, %v284
        %v299 = vpack.c.b16 %v287, %v286
        %v300 = vpack.c.b16 %v289, %v288
        %v301 = vpack.c.b16 %v291, %v290
        %v302 = vpack.c.b16 %v293, %v292
        %v303 = vpack.c.b16 %v295, %v294
        %v328 = vunpack.c.l.b16 %v242
        %v329 = vunpack.c.h.b16 %v242
        %v330 = vunpack.c.l.b16 %v243
        %v331 = vunpack.c.h.b16 %v243
        %v332 = vunpack.c.l.b16 %v244
        %v333 = vunpack.c.h.b16 %v244
        %v334 = vunpack.c.l.b16 %v245
        %v335 = vunpack.c.h.b16 %v245
        %v336 = vunpack.c.l.b16 %v246
        %v337 = vunpack.c.h.b16 %v246
        %v338 = vunpack.c.l.b16 %v247
        %v339 = vunpack.c.h.b16 %v247
        %v340 = vunpack.c.l.b16 %v248
        %v341 = vunpack.c.h.b16 %v248
        %v342 = vunpack.c.l.b16 %v249
        %v343 = vunpack.c.h.b16 %v249
        %v344 = vunpack.c.l.b16 %v250
        %v345 = vunpack.c.h.b16 %v250
        %v346 = vunpack.c.l.b16 %v251
        %v347 = vunpack.c.h.b16 %v251
        %v348 = vunpack.c.l.b16 %v252
        %v349 = vunpack.c.h.b16 %v252
        %v350 = vunpack.c.l.b16 %v253
        %v351 = vunpack.c.h.b16 %v253
        %v352 = vunpack.c.l.b16 %v254
        %v353 = vunpack.c.h.b16 %v254
        %v354 = vunpack.c.l.b16 %v255
        %v355 = vunpack.c.h.b16 %v255
        %v356 = vunpack.c.l.b16 %v256
        %v357 = vunpack.c.h.b16 %v256
        %v358 = vunpack.c.l.b16 %v257
        %v359 = vunpack.c.h.b16 %v257
        %v360 = vpack.c.b16 %v330, %v328
        %v361 = vpack.c.b16 %v331, %v329
        %v362 = vpack.c.b16 %v334, %v332
        %v363 = vpack.c.b16 %v335, %v333
        %v364 = vpack.c.b16 %v338, %v336
        %v365 = vpack.c.b16 %v339, %v337
        %v366 = vpack.c.b16 %v342, %v340
        %v367 = vpack.c.b16 %v343, %v341
        %v368 = vpack.c.b16 %v346, %v344
        %v369 = vpack.c.b16 %v347, %v345
        %v370 = vpack.c.b16 %v350, %v348
        %v371 = vpack.c.b16 %v351, %v349
        %v372 = vpack.c.b16 %v354, %v352
        %v373 = vpack.c.b16 %v355, %v353
        %v374 = vpack.c.b16 %v358, %v356
        %v375 = vpack.c.b16 %v359, %v357
        %392 = vmatpush.bf16.msra.mxu0 %v374
        %393 = vmatpush.bf16.msra.mxu0 %v372
        %394 = vmatpush.bf16.msra.mxu0 %v370
        %395 = vmatpush.bf16.msra.mxu0 %v368
        %396 = vmatpush.bf16.msra.mxu0 %v366
        %397 = vmatpush.bf16.msra.mxu0 %v364
        %398 = vmatpush.bf16.msra.mxu0 %v362
        %399 = vmatpush.bf16.msra.mxu0 %v360
        %400 = vmatmul.bf16.gmra.mxu0 %v296
        %v401 = vpop.f32.mrf.mxu0
        %v402 = vadd.f32 %v260, %v401
        %v403 = vpop.f32.mrf.mxu0
        %v404 = vadd.f32 %v260, %v403
        %405 = vmatmul.bf16.gmra.mxu0 %v297
        %v406 = vpop.f32.mrf.mxu0
        %v407 = vadd.f32 %v260, %v406
        %v408 = vpop.f32.mrf.mxu0
        %v409 = vadd.f32 %v260, %v408
        %410 = vmatmul.bf16.gmra.mxu0 %v298
        %v411 = vpop.f32.mrf.mxu0
        %v412 = vadd.f32 %v260, %v411
        %v413 = vpop.f32.mrf.mxu0
        %v414 = vadd.f32 %v260, %v413
        %415 = vmatmul.bf16.gmra.mxu0 %v299
        %v416 = vpop.f32.mrf.mxu0
        %v417 = vadd.f32 %v260, %v416
        %v418 = vpop.f32.mrf.mxu0
        %v419 = vadd.f32 %v260, %v418
        %420 = vmatmul.bf16.gmra.mxu0 %v300
        %v421 = vpop.f32.mrf.mxu0
        %v422 = vadd.f32 %v260, %v421
        %v423 = vpop.f32.mrf.mxu0
        %v424 = vadd.f32 %v260, %v423
        %425 = vmatmul.bf16.gmra.mxu0 %v301
        %v426 = vpop.f32.mrf.mxu0
        %v427 = vadd.f32 %v260, %v426
        %v428 = vpop.f32.mrf.mxu0
        %v429 = vadd.f32 %v260, %v428
        %430 = vmatmul.bf16.gmra.mxu0 %v302
        %v431 = vpop.f32.mrf.mxu0
        %v432 = vadd.f32 %v260, %v431
        %v433 = vpop.f32.mrf.mxu0
        %v434 = vadd.f32 %v260, %v433
        %435 = vmatmul.bf16.gmra.mxu0 %v303
        %v436 = vpop.f32.mrf.mxu0
        %v437 = vadd.f32 %v260, %v436
        %v438 = vpop.f32.mrf.mxu0
        %v439 = vadd.f32 %v260, %v438
        %440 = vdwg.mxu0
        %441 = vmatpush.bf16.msra.mxu0 %v375
        %442 = vmatpush.bf16.msra.mxu0 %v373
        %443 = vmatpush.bf16.msra.mxu0 %v371
        %444 = vmatpush.bf16.msra.mxu0 %v369
        %445 = vmatpush.bf16.msra.mxu0 %v367
        %446 = vmatpush.bf16.msra.mxu0 %v365
        %447 = vmatpush.bf16.msra.mxu0 %v363
        %448 = vmatpush.bf16.msra.mxu0 %v361
        %449 = vmatmul.bf16.gmra.mxu0 %v296
        %v450 = vpop.f32.mrf.mxu0
        %v451 = vadd.f32 %v261, %v450
        %v452 = vpop.f32.mrf.mxu0
        %v453 = vadd.f32 %v261, %v452
        %454 = vmatmul.bf16.gmra.mxu0 %v297
        %v455 = vpop.f32.mrf.mxu0
        %v456 = vadd.f32 %v261, %v455
        %v457 = vpop.f32.mrf.mxu0
        %v458 = vadd.f32 %v261, %v457
        %459 = vmatmul.bf16.gmra.mxu0 %v298
        %v460 = vpop.f32.mrf.mxu0
        %v461 = vadd.f32 %v261, %v460
        %v462 = vpop.f32.mrf.mxu0
        %v463 = vadd.f32 %v261, %v462
        %464 = vmatmul.bf16.gmra.mxu0 %v299
        %v465 = vpop.f32.mrf.mxu0
        %v466 = vadd.f32 %v261, %v465
        %v467 = vpop.f32.mrf.mxu0
        %v468 = vadd.f32 %v261, %v467
        %469 = vmatmul.bf16.gmra.mxu0 %v300
        %v470 = vpop.f32.mrf.mxu0
        %v471 = vadd.f32 %v261, %v470
        %v472 = vpop.f32.mrf.mxu0
        %v473 = vadd.f32 %v261, %v472
        %474 = vmatmul.bf16.gmra.mxu0 %v301
        %v475 = vpop.f32.mrf.mxu0
        %v476 = vadd.f32 %v261, %v475
        %v477 = vpop.f32.mrf.mxu0
        %v478 = vadd.f32 %v261, %v477
        %479 = vmatmul.bf16.gmra.mxu0 %v302
        %v480 = vpop.f32.mrf.mxu0
        %v481 = vadd.f32 %v261, %v480
        %v482 = vpop.f32.mrf.mxu0
        %v483 = vadd.f32 %v261, %v482
        %484 = vmatmul.bf16.gmra.mxu0 %v303
        %v485 = vpop.f32.mrf.mxu0
        %v486 = vadd.f32 %v261, %v485
        %v487 = vpop.f32.mrf.mxu0
        %v488 = vadd.f32 %v261, %v487
        %489 = vdwg.mxu0
        %v490 = vmax.f32 %v402, 0.0
        %v491 = vmax.f32 %v451, 0.0
        %v492 = vmax.f32 %v404, 0.0
        %v493 = vmax.f32 %v453, 0.0
        %v494 = vmax.f32 %v407, 0.0
        %v495 = vmax.f32 %v456, 0.0
        %v496 = vmax.f32 %v409, 0.0
        %v497 = vmax.f32 %v458, 0.0
        %v498 = vmax.f32 %v412, 0.0
        %v499 = vmax.f32 %v461, 0.0
        %v500 = vmax.f32 %v414, 0.0
        %v501 = vmax.f32 %v463, 0.0
        %v502 = vmax.f32 %v417, 0.0
        %v503 = vmax.f32 %v466, 0.0
        %v504 = vmax.f32 %v419, 0.0
        %v505 = vmax.f32 %v468, 0.0
        %v506 = vmax.f32 %v422, 0.0
        %v507 = vmax.f32 %v471, 0.0
        %v508 = vmax.f32 %v424, 0.0
        %v509 = vmax.f32 %v473, 0.0
        %v510 = vmax.f32 %v427, 0.0
        %v511 = vmax.f32 %v476, 0.0
        %v512 = vmax.f32 %v429, 0.0
        %v513 = vmax.f32 %v478, 0.0
        %v514 = vmax.f32 %v432, 0.0
        %v515 = vmax.f32 %v481, 0.0
        %v516 = vmax.f32 %v434, 0.0
        %v517 = vmax.f32 %v483, 0.0
        %v518 = vmax.f32 %v437, 0.0
        %v519 = vmax.f32 %v486, 0.0
        %v520 = vmax.f32 %v439, 0.0
        %v521 = vmax.f32 %v488, 0.0
        %v522 = vpack.c.bf16 %v492, %v490
        %v523 = vpack.c.bf16 %v493, %v491
        %v524 = vpack.c.bf16 %v496, %v494
        %v525 = vpack.c.bf16 %v497, %v495
        %v526 = vpack.c.bf16 %v500, %v498
        %v527 = vpack.c.bf16 %v501, %v499
        %v528 = vpack.c.bf16 %v504, %v502
        %v529 = vpack.c.bf16 %v505, %v503
        %v530 = vpack.c.bf16 %v508, %v506
        %v531 = vpack.c.bf16 %v509, %v507
        %v532 = vpack.c.bf16 %v512, %v510
        %v533 = vpack.c.bf16 %v513, %v511
        %v534 = vpack.c.bf16 %v516, %v514
        %v535 = vpack.c.bf16 %v517, %v515
        %v536 = vpack.c.bf16 %v520, %v518
        %v537 = vpack.c.bf16 %v521, %v519
        %v538 = vld [vmem:[%s3] sm:$0xf]
        %v539 = vld [vmem:[%s3 + $0x4] sm:$0xf]
        %v540 = vld [vmem:[%s3 + $0x8] sm:$0xf]
        %v541 = vld [vmem:[%s3 + $0xc] sm:$0xf]
        %v542 = vld [vmem:[%s3 + $0x10] sm:$0xf]
        %v543 = vld [vmem:[%s3 + $0x14] sm:$0xf]
        %v544 = vld [vmem:[%s3 + $0x18] sm:$0xf]
        %v545 = vld [vmem:[%s3 + $0x1c] sm:$0xf]
        %v546 = vld [vmem:[%s3 + $0x20] sm:$0xf]
        %v547 = vld [vmem:[%s3 + $0x24] sm:$0xf]
        %v548 = vld [vmem:[%s3 + $0x28] sm:$0xf]
        %v549 = vld [vmem:[%s3 + $0x2c] sm:$0xf]
        %v550 = vld [vmem:[%s3 + $0x30] sm:$0xf]
        %v551 = vld [vmem:[%s3 + $0x34] sm:$0xf]
        %v552 = vld [vmem:[%s3 + $0x38] sm:$0xf]
        %v553 = vld [vmem:[%s3 + $0x3c] sm:$0xf]
        %v554 = vld [vmem:[%s3 + $0x40] sm:$0xf]
        %v555 = vld [vmem:[%s3 + $0x44] sm:$0xf]
        %v556 = vld [vmem:[%s3 + $0x48] sm:$0xf]
        %v557 = vld [vmem:[%s3 + $0x4c] sm:$0xf]
        %v558 = vld [vmem:[%s3 + $0x50] sm:$0xf]
        %v559 = vld [vmem:[%s3 + $0x54] sm:$0xf]
        %v560 = vld [vmem:[%s3 + $0x58] sm:$0xf]
        %v561 = vld [vmem:[%s3 + $0x5c] sm:$0xf]
        %v562 = vld [vmem:[%s3 + $0x60] sm:$0xf]
        %v563 = vld [vmem:[%s3 + $0x64] sm:$0xf]
        %v564 = vld [vmem:[%s3 + $0x68] sm:$0xf]
        %v565 = vld [vmem:[%s3 + $0x6c] sm:$0xf]
        %v566 = vld [vmem:[%s3 + $0x70] sm:$0xf]
        %v567 = vld [vmem:[%s3 + $0x74] sm:$0xf]
        %v568 = vld [vmem:[%s3 + $0x78] sm:$0xf]
        %v569 = vld [vmem:[%s3 + $0x7c] sm:$0xf]
        %v570 = vld [vmem:[%s4] sm:$0x1]
        %v572 = vperm.slane %v570, 0
        %v606 = vunpack.c.l.b16 %v538
        %v607 = vunpack.c.l.b16 %v539
        %v608 = vunpack.c.l.b16 %v540
        %v609 = vunpack.c.l.b16 %v541
        %v610 = vunpack.c.l.b16 %v542
        %v611 = vunpack.c.l.b16 %v543
        %v612 = vunpack.c.l.b16 %v544
        %v613 = vunpack.c.l.b16 %v545
        %v614 = vunpack.c.l.b16 %v546
        %v615 = vunpack.c.l.b16 %v547
        %v616 = vunpack.c.l.b16 %v548
        %v617 = vunpack.c.l.b16 %v549
        %v618 = vunpack.c.l.b16 %v550
        %v619 = vunpack.c.l.b16 %v551
        %v620 = vunpack.c.l.b16 %v552
        %v621 = vunpack.c.l.b16 %v553
        %v622 = vunpack.c.l.b16 %v554
        %v623 = vunpack.c.l.b16 %v555
        %v624 = vunpack.c.l.b16 %v556
        %v625 = vunpack.c.l.b16 %v557
        %v626 = vunpack.c.l.b16 %v558
        %v627 = vunpack.c.l.b16 %v559
        %v628 = vunpack.c.l.b16 %v560
        %v629 = vunpack.c.l.b16 %v561
        %v630 = vunpack.c.l.b16 %v562
        %v631 = vunpack.c.l.b16 %v563
        %v632 = vunpack.c.l.b16 %v564
        %v633 = vunpack.c.l.b16 %v565
        %v634 = vunpack.c.l.b16 %v566
        %v635 = vunpack.c.l.b16 %v567
        %v636 = vunpack.c.l.b16 %v568
        %v637 = vunpack.c.l.b16 %v569
        %v638 = vpack.c.b16 %v607, %v606
        %v639 = vpack.c.b16 %v609, %v608
        %v640 = vpack.c.b16 %v611, %v610
        %v641 = vpack.c.b16 %v613, %v612
        %v642 = vpack.c.b16 %v615, %v614
        %v643 = vpack.c.b16 %v617, %v616
        %v644 = vpack.c.b16 %v619, %v618
        %v645 = vpack.c.b16 %v621, %v620
        %v646 = vpack.c.b16 %v623, %v622
        %v647 = vpack.c.b16 %v625, %v624
        %v648 = vpack.c.b16 %v627, %v626
        %v649 = vpack.c.b16 %v629, %v628
        %v650 = vpack.c.b16 %v631, %v630
        %v651 = vpack.c.b16 %v633, %v632
        %v652 = vpack.c.b16 %v635, %v634
        %v653 = vpack.c.b16 %v637, %v636
        %670 = vmatpush.bf16.msra.mxu0 %v645
        %671 = vmatpush.bf16.msra.mxu0 %v644
        %672 = vmatpush.bf16.msra.mxu0 %v643
        %673 = vmatpush.bf16.msra.mxu0 %v642
        %674 = vmatpush.bf16.msra.mxu0 %v641
        %675 = vmatpush.bf16.msra.mxu0 %v640
        %676 = vmatpush.bf16.msra.mxu0 %v639
        %677 = vmatpush.bf16.msra.mxu0 %v638
        %678 = vmatmul.bf16.gmra.mxu0 %v522
        %v679 = vpop.f32.mrf.mxu0
        %v680 = vadd.f32 %v572, %v679
        %v681 = vpop.f32.mrf.mxu0
        %v682 = vadd.f32 %v572, %v681
        %683 = vmatmul.bf16.gmra.mxu0 %v524
        %v684 = vpop.f32.mrf.mxu0
        %v685 = vadd.f32 %v572, %v684
        %v686 = vpop.f32.mrf.mxu0
        %v687 = vadd.f32 %v572, %v686
        %688 = vmatmul.bf16.gmra.mxu0 %v526
        %v689 = vpop.f32.mrf.mxu0
        %v690 = vadd.f32 %v572, %v689
        %v691 = vpop.f32.mrf.mxu0
        %v692 = vadd.f32 %v572, %v691
        %693 = vmatmul.bf16.gmra.mxu0 %v528
        %v694 = vpop.f32.mrf.mxu0
        %v695 = vadd.f32 %v572, %v694
        %v696 = vpop.f32.mrf.mxu0
        %v697 = vadd.f32 %v572, %v696
        %698 = vmatmul.bf16.gmra.mxu0 %v530
        %v699 = vpop.f32.mrf.mxu0
        %v700 = vadd.f32 %v572, %v699
        %v701 = vpop.f32.mrf.mxu0
        %v702 = vadd.f32 %v572, %v701
        %703 = vmatmul.bf16.gmra.mxu0 %v532
        %v704 = vpop.f32.mrf.mxu0
        %v705 = vadd.f32 %v572, %v704
        %v706 = vpop.f32.mrf.mxu0
        %v707 = vadd.f32 %v572, %v706
        %708 = vmatmul.bf16.gmra.mxu0 %v534
        %v709 = vpop.f32.mrf.mxu0
        %v710 = vadd.f32 %v572, %v709
        %v711 = vpop.f32.mrf.mxu0
        %v712 = vadd.f32 %v572, %v711
        %713 = vmatmul.bf16.gmra.mxu0 %v536
        %v714 = vpop.f32.mrf.mxu0
        %v715 = vadd.f32 %v572, %v714
        %v716 = vpop.f32.mrf.mxu0
        %v717 = vadd.f32 %v572, %v716
        %718 = vdwg.mxu0
        %719 = vmatpush.bf16.msra.mxu0 %v653
        %720 = vmatpush.bf16.msra.mxu0 %v652
        %721 = vmatpush.bf16.msra.mxu0 %v651
        %722 = vmatpush.bf16.msra.mxu0 %v650
        %723 = vmatpush.bf16.msra.mxu0 %v649
        %724 = vmatpush.bf16.msra.mxu0 %v648
        %725 = vmatpush.bf16.msra.mxu0 %v647
        %726 = vmatpush.bf16.msra.mxu0 %v646
        %727 = vmatmul.bf16.gmra.mxu0 %v523
        %v728 = vpop.f32.mrf.mxu0
        %v729 = vadd.f32 %v680, %v728
        %v730 = vpop.f32.mrf.mxu0
        %v731 = vadd.f32 %v682, %v730
        %732 = vmatmul.bf16.gmra.mxu0 %v525
        %v733 = vpop.f32.mrf.mxu0
        %v734 = vadd.f32 %v685, %v733
        %v735 = vpop.f32.mrf.mxu0
        %v736 = vadd.f32 %v687, %v735
        %737 = vmatmul.bf16.gmra.mxu0 %v527
        %v738 = vpop.f32.mrf.mxu0
        %v739 = vadd.f32 %v690, %v738
        %v740 = vpop.f32.mrf.mxu0
        %v741 = vadd.f32 %v692, %v740
        %742 = vmatmul.bf16.gmra.mxu0 %v529
        %v743 = vpop.f32.mrf.mxu0
        %v744 = vadd.f32 %v695, %v743
        %v745 = vpop.f32.mrf.mxu0
        %v746 = vadd.f32 %v697, %v745
        %747 = vmatmul.bf16.gmra.mxu0 %v531
        %v748 = vpop.f32.mrf.mxu0
        %v749 = vadd.f32 %v700, %v748
        %v750 = vpop.f32.mrf.mxu0
        %v751 = vadd.f32 %v702, %v750
        %752 = vmatmul.bf16.gmra.mxu0 %v533
        %v753 = vpop.f32.mrf.mxu0
        %v754 = vadd.f32 %v705, %v753
        %v755 = vpop.f32.mrf.mxu0
        %v756 = vadd.f32 %v707, %v755
        %757 = vmatmul.bf16.gmra.mxu0 %v535
        %v758 = vpop.f32.mrf.mxu0
        %v759 = vadd.f32 %v710, %v758
        %v760 = vpop.f32.mrf.mxu0
        %v761 = vadd.f32 %v712, %v760
        %762 = vmatmul.bf16.gmra.mxu0 %v537
        %v763 = vpop.f32.mrf.mxu0
        %v764 = vadd.f32 %v715, %v763
        %v765 = vpop.f32.mrf.mxu0
        %v766 = vadd.f32 %v717, %v765
        %767 = vdwg.mxu0
        %768 = vst [vmem:[%s218] sm:$0xff] %v729
        %769 = vst [vmem:[%s218 + $0x8] sm:$0xff] %v731
        %770 = vst [vmem:[%s218 + $0x10] sm:$0xff] %v734
        %771 = vst [vmem:[%s218 + $0x18] sm:$0xff] %v736
        %772 = vst [vmem:[%s218 + $0x20] sm:$0xff] %v739
        %773 = vst [vmem:[%s218 + $0x28] sm:$0xff] %v741
        %774 = vst [vmem:[%s218 + $0x30] sm:$0xff] %v744
        %775 = vst [vmem:[%s218 + $0x38] sm:$0xff] %v746
        %776 = vst [vmem:[%s218 + $0x40] sm:$0xff] %v749
        %777 = vst [vmem:[%s218 + $0x48] sm:$0xff] %v751
        %778 = vst [vmem:[%s218 + $0x50] sm:$0xff] %v754
        %779 = vst [vmem:[%s218 + $0x58] sm:$0xff] %v756
        %780 = vst [vmem:[%s218 + $0x60] sm:$0xff] %v759
        %781 = vst [vmem:[%s218 + $0x68] sm:$0xff] %v761
        %782 = vst [vmem:[%s218 + $0x70] sm:$0xff] %v764
        %783 = vst [vmem:[%s218 + $0x78] sm:$0xff] %v766
        %s784 = sand.u32 %s137, 1
        %s785 = scalar_lea.sflag [#allocation3], %s784
        %s786 = sand.u32 %s137, 1
        %s787 = smul.addr %s786, 128
        %s788 = scalar_lea.vmem [#allocation2], %s787
        // Predicated region
        $region41: #{maml_forward_packed.1} parent=39 // pred_check
          %p789 = pneg %p147
        $region42: #{maml_forward_packed.1} parent=39 // pred_check_branch
          %791 = sbr.rel (%p789) target = $region44
        $region43: #{maml_forward_packed.1} parent=39 // pred_region
          %s792 = smul.u32 16, %s19
          %794 = vsyncadd %s785, 0
          %s795 = smul.addr %s792, 8
          %s796 = scalar_lea.hbm %s5, %s795
          %s797 = sshll.u32 %s788, 4
          %s798 = int_to_ptr.vmem [resolvable:$true] %s797
          %s799 = sshll.u32 %s796, 4
          %s800 = int_to_ptr.hbm [resolvable:$true] %s799
          %805 = dma.vmem_to_hbm [thread:$0]  %s798, 2048, %s800, %s785, 128, 128, 8
        $region44: #{maml_forward_packed.1} parent=39 // pred_fallthru
          _
      $region40: #{maml_forward_packed.1} parent=5 // pred_fallthru
        _
      %p806 = scmp.le.s32.totalorder 2, %s14
      // Predicated region
      $region45: #{maml_forward_packed.1} parent=5 // pred_check
        %p807 = pneg %p806
      $region46: #{maml_forward_packed.1} parent=5 // pred_check_branch
        %809 = sbr.rel (%p807) target = $region48
      $region47: #{maml_forward_packed.1} parent=5 // pred_region
        %s810 = ssub.s32 %s14, 2
        // Predicated region
        $region49: #{maml_forward_packed.1} parent=47 // pred_check
          %p811 = pneg %p153
        $region50: #{maml_forward_packed.1} parent=47 // pred_check_branch
          %813 = sbr.rel (%p811) target = $region52
        $region51: #{maml_forward_packed.1} parent=47 // pred_region
          %s814 = sand.u32 %s138, 1
          %s815 = scalar_lea.sflag [#allocation3], %s814
          %s816 = sand.u32 %s138, 1
          %s817 = smul.addr %s816, 128
          %s818 = scalar_lea.vmem [#allocation2], %s817
          %820 = dma.done %s815, 2048
        $region52: #{maml_forward_packed.1} parent=47 // pred_fallthru
          _
      $region48: #{maml_forward_packed.1} parent=5 // pred_fallthru
        _
    $region6: #{maml_forward_packed.1} parent=1 // loop_footer
      %s18 = sadd.s32 1, %s14
    $region7: #{maml_forward_packed.1} parent=1 // loop_footer_branch
      %13 = sbr.rel target = $region3
    $region8: #{maml_forward_packed.1} parent=1 // loop_exit
      _
    %821 = vsyncpa [#allocation3], 1
    %s822 = scalar_lea.sflag [#allocation3], 1
    %823 = vsyncpa %s822, 1

</llo_original>
